<compile_context>
chip_gen: v6e
topology: v6e:2x2x1
jax: 0.10.0
libtpu: 0.0.40
codegen_flags: <defaults>
</compile_context>

<pallas_src>
import functools

import jax
import jax.numpy as jnp
from jax.experimental import pallas as pl
from jax.experimental.pallas import tpu as pltpu


def rnn_kernel(x_ref, wih_ref, whh_ref, b_ref, wfc_ref, bfc_ref, out_ref,
               *, batch, seq_len):
    # x_ref:   (T*B, I)  time-major flattened input
    # wih_ref: (I, H)    W_ih^T (right-multiply form)
    # whh_ref: (H, H)    W_hh^T
    # b_ref:   (1, H)    b_ih + b_hh
    # wfc_ref: (1, H)    fc weight row
    # bfc_ref: (1, 1)    fc bias
    # out_ref: (B, 1)
    B = batch
    T = seq_len

    # Loop-invariant loads (kept in vregs for the whole recurrence).
    wih = wih_ref[...]
    whh = whh_ref[...]
    bias = b_ref[...]

    # Input projection for every time step in ONE MXU matmul.
    # (T*B, I) @ (I, H) -> (T*B, H); rows [t*B, (t+1)*B) belong to step t.
    xproj = jnp.dot(x_ref[...], wih, preferred_element_type=jnp.float32) + bias

    # Recurrence: only h @ W_hh^T remains on the serial critical path.
    # Fully unrolled -> static contiguous slices of xproj, no loop overhead.
    h = jnp.tanh(xproj[0:B, :])                       # h0 = 0, so skip h @ W_hh
    for t in range(1, T):
        h = jnp.tanh(
            xproj[t * B:(t + 1) * B, :]
            + jnp.dot(h, whh, preferred_element_type=jnp.float32)
        )

    # Final Linear(H, 1): VPU elementwise multiply + lane reduce (XLU), cheaper
    # than an N=1 MXU pass at this width.
    out_ref[...] = jnp.sum(h * wfc_ref[...], axis=-1, keepdims=True) + bfc_ref[...]


def rnn_model_forward(x, w_ih, w_hh, b_ih, b_hh, w_fc, b_fc):
    """x: (B, T, I). Returns (B, 1) float32, matching the PyTorch module."""
    B, T, I = x.shape
    H = w_hh.shape[0]

    # Parameter / layout glue in plain JAX (one-time, tiny).
    x_tm = jnp.transpose(x, (1, 0, 2)).reshape(T * B, I).astype(jnp.float32)  # (T*B, I)
    wih_t = jnp.transpose(w_ih).astype(jnp.float32)                           # (I, H)
    whh_t = jnp.transpose(w_hh).astype(jnp.float32)                           # (H, H)
    b_comb = (b_ih + b_hh).reshape(1, H).astype(jnp.float32)                  # (1, H)
    wfc_row = w_fc.reshape(1, H).astype(jnp.float32)                          # (1, H)
    bfc = b_fc.reshape(1, 1).astype(jnp.float32)                              # (1, 1)

    vm = pltpu.MemorySpace.VMEM
    kernel = functools.partial(rnn_kernel, batch=B, seq_len=T)

    out = pl.pallas_call(
        kernel,
        out_shape=jax.ShapeDtypeStruct((B, 1), jnp.float32),
        in_specs=[
            pl.BlockSpec(memory_space=vm),  # x (T*B, I)
            pl.BlockSpec(memory_space=vm),  # W_ih^T
            pl.BlockSpec(memory_space=vm),  # W_hh^T
            pl.BlockSpec(memory_space=vm),  # combined bias
            pl.BlockSpec(memory_space=vm),  # fc weight row
            pl.BlockSpec(memory_space=vm),  # fc bias
        ],
        out_specs=pl.BlockSpec(memory_space=vm),
    )(x_tm, wih_t, whh_t, b_comb, wfc_row, bfc)
    return out


def rnn_model_reference(x, w_ih, w_hh, b_ih, b_hh, w_fc, b_fc):
    """Pure-JAX reference mirroring torch.nn.RNN(tanh, batch_first) + Linear."""
    B, T, I = x.shape
    H = w_hh.shape[0]
    h = jnp.zeros((B, H), jnp.float32)
    for t in range(T):
        h = jnp.tanh(x[:, t, :] @ w_ih.T + b_ih + h @ w_hh.T + b_hh)
    return h @ w_fc.T + b_fc


if __name__ == "__main__":
    # Small shapes consistent with the module's forward.
    B, T, I, H = 2, 8, 4, 32

    key = jax.random.PRNGKey(0)
    ks = jax.random.split(key, 7)
    bound = 1.0 / jnp.sqrt(jnp.float32(H))  # PyTorch default init range

    x = jax.random.normal(ks[0], (B, T, I), jnp.float32)
    w_ih = jax.random.uniform(ks[1], (H, I), jnp.float32, -bound, bound)
    w_hh = jax.random.uniform(ks[2], (H, H), jnp.float32, -bound, bound)
    b_ih = jax.random.uniform(ks[3], (H,), jnp.float32, -bound, bound)
    b_hh = jax.random.uniform(ks[4], (H,), jnp.float32, -bound, bound)
    w_fc = jax.random.uniform(ks[5], (1, H), jnp.float32, -bound, bound)
    b_fc = jax.random.uniform(ks[6], (1,), jnp.float32, -bound, bound)

    out = rnn_model_forward(x, w_ih, w_hh, b_ih, b_hh, w_fc, b_fc)
    out = jax.block_until_ready(out)

    ref = rnn_model_reference(x, w_ih, w_hh, b_ih, b_hh, w_fc, b_fc)
    assert out.shape == (B, 1), out.shape
    assert jnp.allclose(out, ref, atol=1e-5, rtol=1e-5), (out, ref)

    print("KERNEL_OK")
</pallas_src>

<mosaic_0001>
module attributes {stable_mosaic.version = 11 : i64} {
  func.func @rnn_kernel(%arg0: memref<16x4xf32, #tpu.memory_space<vmem>>, %arg1: memref<4x32xf32, #tpu.memory_space<vmem>>, %arg2: memref<32x32xf32, #tpu.memory_space<vmem>>, %arg3: memref<1x32xf32, #tpu.memory_space<vmem>>, %arg4: memref<1x32xf32, #tpu.memory_space<vmem>>, %arg5: memref<1x1xf32, #tpu.memory_space<vmem>>, %arg6: memref<2x1xf32, #tpu.memory_space<vmem>>) attributes {dimension_semantics = [], scalar_prefetch = 0 : i64, scratch_operands = 0 : i64, tpu.core_type = #tpu.core_type<tc>} {
    %c0 = arith.constant 0 : index
    %c0_0 = arith.constant 0 : index
    %0 = vector.load %arg1[%c0, %c0_0] : memref<4x32xf32, #tpu.memory_space<vmem>>, vector<4x32xf32>
    %c0_1 = arith.constant 0 : index
    %c0_2 = arith.constant 0 : index
    %1 = vector.load %arg2[%c0_1, %c0_2] : memref<32x32xf32, #tpu.memory_space<vmem>>, vector<32x32xf32>
    %c0_3 = arith.constant 0 : index
    %c0_4 = arith.constant 0 : index
    %2 = vector.load %arg3[%c0_3, %c0_4] : memref<1x32xf32, #tpu.memory_space<vmem>>, vector<1x32xf32>
    %c0_5 = arith.constant 0 : index
    %c0_6 = arith.constant 0 : index
    %3 = vector.load %arg0[%c0_5, %c0_6] : memref<16x4xf32, #tpu.memory_space<vmem>>, vector<16x4xf32>
    %cst = arith.constant dense<0.000000e+00> : vector<16x32xf32>
    %4 = tpu.matmul %3, %0, %cst {dimension_numbers = #tpu.dot_dimension_numbers<[1], [0], [0], [1], [0, 0, 1, 1], [], []>} : vector<16x4xf32>, vector<4x32xf32>, vector<16x32xf32> -> vector<16x32xf32>
    %5 = vector.broadcast %2 : vector<1x32xf32> to vector<16x32xf32>
    %6 = arith.addf %4, %5 : vector<16x32xf32>
    %7 = vector.extract_strided_slice %6 {offsets = [0, 0], sizes = [2, 32], strides = [1, 1]} : vector<16x32xf32> to vector<2x32xf32>
    %8 = math.tanh %7 : vector<2x32xf32>
    %9 = vector.extract_strided_slice %6 {offsets = [2, 0], sizes = [2, 32], strides = [1, 1]} : vector<16x32xf32> to vector<2x32xf32>
    %cst_7 = arith.constant dense<0.000000e+00> : vector<2x32xf32>
    %10 = tpu.matmul %8, %1, %cst_7 {dimension_numbers = #tpu.dot_dimension_numbers<[1], [0], [0], [1], [0, 0, 1, 1], [], []>} : vector<2x32xf32>, vector<32x32xf32>, vector<2x32xf32> -> vector<2x32xf32>
    %11 = arith.addf %9, %10 : vector<2x32xf32>
    %12 = math.tanh %11 : vector<2x32xf32>
    %13 = vector.extract_strided_slice %6 {offsets = [4, 0], sizes = [2, 32], strides = [1, 1]} : vector<16x32xf32> to vector<2x32xf32>
    %cst_8 = arith.constant dense<0.000000e+00> : vector<2x32xf32>
    %14 = tpu.matmul %12, %1, %cst_8 {dimension_numbers = #tpu.dot_dimension_numbers<[1], [0], [0], [1], [0, 0, 1, 1], [], []>} : vector<2x32xf32>, vector<32x32xf32>, vector<2x32xf32> -> vector<2x32xf32>
    %15 = arith.addf %13, %14 : vector<2x32xf32>
    %16 = math.tanh %15 : vector<2x32xf32>
    %17 = vector.extract_strided_slice %6 {offsets = [6, 0], sizes = [2, 32], strides = [1, 1]} : vector<16x32xf32> to vector<2x32xf32>
    %cst_9 = arith.constant dense<0.000000e+00> : vector<2x32xf32>
    %18 = tpu.matmul %16, %1, %cst_9 {dimension_numbers = #tpu.dot_dimension_numbers<[1], [0], [0], [1], [0, 0, 1, 1], [], []>} : vector<2x32xf32>, vector<32x32xf32>, vector<2x32xf32> -> vector<2x32xf32>
    %19 = arith.addf %17, %18 : vector<2x32xf32>
    %20 = math.tanh %19 : vector<2x32xf32>
    %21 = vector.extract_strided_slice %6 {offsets = [8, 0], sizes = [2, 32], strides = [1, 1]} : vector<16x32xf32> to vector<2x32xf32>
    %cst_10 = arith.constant dense<0.000000e+00> : vector<2x32xf32>
    %22 = tpu.matmul %20, %1, %cst_10 {dimension_numbers = #tpu.dot_dimension_numbers<[1], [0], [0], [1], [0, 0, 1, 1], [], []>} : vector<2x32xf32>, vector<32x32xf32>, vector<2x32xf32> -> vector<2x32xf32>
    %23 = arith.addf %21, %22 : vector<2x32xf32>
    %24 = math.tanh %23 : vector<2x32xf32>
    %25 = vector.extract_strided_slice %6 {offsets = [10, 0], sizes = [2, 32], strides = [1, 1]} : vector<16x32xf32> to vector<2x32xf32>
    %cst_11 = arith.constant dense<0.000000e+00> : vector<2x32xf32>
    %26 = tpu.matmul %24, %1, %cst_11 {dimension_numbers = #tpu.dot_dimension_numbers<[1], [0], [0], [1], [0, 0, 1, 1], [], []>} : vector<2x32xf32>, vector<32x32xf32>, vector<2x32xf32> -> vector<2x32xf32>
    %27 = arith.addf %25, %26 : vector<2x32xf32>
    %28 = math.tanh %27 : vector<2x32xf32>
    %29 = vector.extract_strided_slice %6 {offsets = [12, 0], sizes = [2, 32], strides = [1, 1]} : vector<16x32xf32> to vector<2x32xf32>
    %cst_12 = arith.constant dense<0.000000e+00> : vector<2x32xf32>
    %30 = tpu.matmul %28, %1, %cst_12 {dimension_numbers = #tpu.dot_dimension_numbers<[1], [0], [0], [1], [0, 0, 1, 1], [], []>} : vector<2x32xf32>, vector<32x32xf32>, vector<2x32xf32> -> vector<2x32xf32>
    %31 = arith.addf %29, %30 : vector<2x32xf32>
    %32 = math.tanh %31 : vector<2x32xf32>
    %33 = vector.extract_strided_slice %6 {offsets = [14, 0], sizes = [2, 32], strides = [1, 1]} : vector<16x32xf32> to vector<2x32xf32>
    %cst_13 = arith.constant dense<0.000000e+00> : vector<2x32xf32>
    %34 = tpu.matmul %32, %1, %cst_13 {dimension_numbers = #tpu.dot_dimension_numbers<[1], [0], [0], [1], [0, 0, 1, 1], [], []>} : vector<2x32xf32>, vector<32x32xf32>, vector<2x32xf32> -> vector<2x32xf32>
    %35 = arith.addf %33, %34 : vector<2x32xf32>
    %36 = math.tanh %35 : vector<2x32xf32>
    %c0_14 = arith.constant 0 : index
    %c0_15 = arith.constant 0 : index
    %37 = vector.load %arg4[%c0_14, %c0_15] : memref<1x32xf32, #tpu.memory_space<vmem>>, vector<1x32xf32>
    %38 = vector.broadcast %37 : vector<1x32xf32> to vector<2x32xf32>
    %39 = arith.mulf %36, %38 : vector<2x32xf32>
    %cst_16 = arith.constant dense<0.000000e+00> : vector<2xf32>
    %40 = vector.multi_reduction <add>, %39, %cst_16 [1] : vector<2x32xf32> to vector<2xf32>
    %41 = vector.shape_cast %40 : vector<2xf32> to vector<2x1xf32>
    %c0_17 = arith.constant 0 : index
    %c0_18 = arith.constant 0 : index
    %42 = vector.load %arg5[%c0_17, %c0_18] : memref<1x1xf32, #tpu.memory_space<vmem>>, vector<1x1xf32>
    %43 = vector.broadcast %42 : vector<1x1xf32> to vector<2x1xf32>
    %44 = arith.addf %41, %43 : vector<2x1xf32>
    %c0_19 = arith.constant 0 : index
    %c0_20 = arith.constant 0 : index
    %45 = vector.load %arg6[%c0_19, %c0_20] : memref<2x1xf32, #tpu.memory_space<vmem>>, vector<2x1xf32>
    tpu.vector_store %arg6[%c0_19, %c0_20], %44 {strides = array<i32>} : memref<2x1xf32, #tpu.memory_space<vmem>>, vector<2x1xf32>,
    return
  }
}

</mosaic_0001>

<llo_original>
// kernel: tpu_custom_call.1
$region0: #{tpu_custom_call.1}
  #allocation0 [shape = 'u32[]', space=smem, size = 0x4, offset = 0x4, fixed_abs, tag = 'smem constant byte address 0x4 - core index']
  #allocation1 [shape = 'u32[144,128]{1,0:T(1,128)}', space=vmem, size = 0x12000, scoped, tag = 'internal scratch']
  #allocation2 [shape = 'f32[1,1]{1,0:T(1,128)S(1)}', space=vmem, size = 0x200, scoped, tag = 'scoped memory for tpu_custom_call.1']
  %s0 = inlined_call_operand.vmem [shape: f32[16,4], index: 0, kind: input, shape index: {}]
  %s1 = inlined_call_operand.vmem [shape: f32[4,32], index: 1, kind: input, shape index: {}]
  %s2 = inlined_call_operand.hbm [shape: f32[32,32], index: 2, kind: input, shape index: {}]
  %s3 = inlined_call_operand.vmem [shape: f32[1,32], index: 3, kind: input, shape index: {}]
  %s4 = inlined_call_operand.vmem [shape: f32[1,32], index: 4, kind: input, shape index: {}]
  %s5 = inlined_call_operand.<no memory space> [shape: f32[1,1], index: 5, kind: input, shape index: {}]
  %s6 = inlined_call_operand.vmem [shape: f32[2,1], index: 6, kind: output, shape index: {}]
  %s7 = sld [smem:[#allocation0]]
  $region38: #{tpu_custom_call.1} parent=0
    _
  %s9 = ssub.s32 1, %s7
  %s10 = scalar_select 0, %s9, %s7
  %v11 = vstv %s5
  %12 = vst [vmem:[#allocation2] sm:$0x1] %v11
  $region1: #{tpu_custom_call.1} parent=0
    #allocation3 [shape = 'u8[16384]{0}', space=vmem, size = 0x4000, scoped, tag = 'input window, operand 2, single buffered']
    #allocation4 [shape = 's32[1]{0}', space=sflag, size = 0x4, scoped, tag = 'scoped memory for tpu_custom_call.1']
    %13 = vsyncpa [#allocation4], 0
    // Predicated region
    $region2: #{tpu_custom_call.1} parent=1 // pred_check
      _
    $region3: #{tpu_custom_call.1} parent=1 // pred_check_branch
      %15 = sbr.rel (0) target = $region5
    $region4: #{tpu_custom_call.1} parent=1 // pred_region
      _
    $region5: #{tpu_custom_call.1} parent=1 // pred_fallthru
      _
    // Predicated region
    $region6: #{tpu_custom_call.1} parent=1 // pred_check
      _
    $region7: #{tpu_custom_call.1} parent=1 // pred_check_branch
      %17 = sbr.rel (0) target = $region9
    $region8: #{tpu_custom_call.1} parent=1 // pred_region
      _
    $region9: #{tpu_custom_call.1} parent=1 // pred_fallthru
      _
    // Predicated region
    $region10: #{tpu_custom_call.1} parent=1 // pred_check
      _
    $region11: #{tpu_custom_call.1} parent=1 // pred_check_branch
      %19 = sbr.rel (0) target = $region13
    $region12: #{tpu_custom_call.1} parent=1 // pred_region
      %s21 = ssub.s32 512, 512
      %22 = vsyncadd [#allocation4], %s21
      %s23 = sshll.u32 [#allocation3], 4
      %s24 = int_to_ptr.vmem [resolvable:$true] %s23
      %29 = dma.hbm_to_vmem [thread:$0]  %s2, 512, %s24, [#allocation4], 128, 128, 8
    $region13: #{tpu_custom_call.1} parent=1 // pred_fallthru
      _
    // Predicated region
    $region14: #{tpu_custom_call.1} parent=1 // pred_check
      _
    $region15: #{tpu_custom_call.1} parent=1 // pred_check_branch
      %31 = sbr.rel (0) target = $region17
    $region16: #{tpu_custom_call.1} parent=1 // pred_region
      _
    $region17: #{tpu_custom_call.1} parent=1 // pred_fallthru
      _
    // Predicated region
    $region18: #{tpu_custom_call.1} parent=1 // pred_check
      _
    $region19: #{tpu_custom_call.1} parent=1 // pred_check_branch
      %33 = sbr.rel (0) target = $region21
    $region20: #{tpu_custom_call.1} parent=1 // pred_region
      _
    $region21: #{tpu_custom_call.1} parent=1 // pred_fallthru
      _
    // Predicated region
    $region22: #{tpu_custom_call.1} parent=1 // pred_check
      _
    $region23: #{tpu_custom_call.1} parent=1 // pred_check_branch
      %35 = sbr.rel (0) target = $region25
    $region24: #{tpu_custom_call.1} parent=1 // pred_region
      _
    $region25: #{tpu_custom_call.1} parent=1 // pred_fallthru
      _
    // Predicated region
    $region26: #{tpu_custom_call.1} parent=1 // pred_check
      _
    $region27: #{tpu_custom_call.1} parent=1 // pred_check_branch
      %37 = sbr.rel (0) target = $region29
    $region28: #{tpu_custom_call.1} parent=1 // pred_region
      %38 = dma.done [#allocation4], 512
    $region29: #{tpu_custom_call.1} parent=1 // pred_fallthru
      _
    %v39 = vld [vmem:[%s1] sm:$0xf]
    %v40 = vld [vmem:[#allocation3] sm:$0xff]
    %v41 = vld [vmem:[#allocation3 + $0x8] sm:$0xff]
    %v42 = vld [vmem:[#allocation3 + $0x10] sm:$0xff]
    %v43 = vld [vmem:[#allocation3 + $0x18] sm:$0xff]
    %v44 = vld [vmem:[%s3] sm:$0x1]
    %v45 = vld [vmem:[%s0] sm:$0xff]
    %v46 = vld [vmem:[%s0 + $0x8] sm:$0xff]
    %v48 = vlaneseq
    %v49 = vshrl.u32 %v48, 7
    %v50 = vsub.s32 0, %v49
    %v51 = vrot.slane %v44, %v50
    %vm53 = vcmask 31744
    %v55 = vsel %vm53, %v45, 0
    %v58 = vsel %vm53, %v46, 0
    %vm60 = vcmask 1043456
    %v62 = vsel %vm60, %v39, 0
    %64 = vmatprep.subr.mxu0 0.0
    %65 = vmatpush1.msra.mxu0 0.0
    %66 = vmatprep.subr.mxu0 0.0
    %67 = vmatpush1.msra.mxu0 0.0
    %68 = vmatprep.subr.mxu0 0.0
    %69 = vmatpush1.msra.mxu0 0.0
    %70 = vmatprep.subr.mxu0 0.0
    %71 = vmatpush1.msra.mxu0 0.0
    %72 = vmatprep.subr.mxu0 0.0
    %73 = vmatpush1.msra.mxu0 0.0
    %74 = vmatprep.subr.mxu0 0.0
    %75 = vmatpush1.msra.mxu0 0.0
    %76 = vmatprep.subr.mxu0 0.0
    %77 = vmatpush1.msra.mxu0 0.0
    %78 = vmatprep.subr.mxu0 0.0
    %79 = vmatpush1.msra.mxu0 0.0
    %80 = vmatprep.subr.mxu0 0.0
    %81 = vmatpush1.msra.mxu0 0.0
    %82 = vmatprep.subr.mxu0 0.0
    %83 = vmatpush1.msra.mxu0 0.0
    %84 = vmatprep.subr.mxu0 0.0
    %85 = vmatpush1.msra.mxu0 0.0
    %86 = vmatprep.subr.mxu0 0.0
    %87 = vmatpush1.msra.mxu0 0.0
    %88 = vmatprep.subr.mxu0 0.0
    %89 = vmatpush1.msra.mxu0 0.0
    %90 = vmatprep.subr.mxu0 0.0
    %91 = vmatpush1.msra.mxu0 0.0
    %92 = vmatprep.subr.mxu0 0.0
    %93 = vmatpush1.msra.mxu0 0.0
    %94 = vmatprep.subr.mxu0 0.0
    %95 = vmatpush1.msra.mxu0 %v62
    %96 = vmatprep.subr.mxu0 0.0
    %97 = vmatpush2.msra.mxu0 0.0
    %98 = vmatprep.subr.mxu0 0.0
    %99 = vmatpush2.msra.mxu0 0.0
    %100 = vmatprep.subr.mxu0 0.0
    %101 = vmatpush2.msra.mxu0 0.0
    %102 = vmatprep.subr.mxu0 0.0
    %103 = vmatpush2.msra.mxu0 0.0
    %104 = vmatprep.subr.mxu0 0.0
    %105 = vmatpush2.msra.mxu0 0.0
    %106 = vmatprep.subr.mxu0 0.0
    %107 = vmatpush2.msra.mxu0 0.0
    %108 = vmatprep.subr.mxu0 0.0
    %109 = vmatpush2.msra.mxu0 0.0
    %110 = vmatprep.subr.mxu0 0.0
    %111 = vmatpush2.msra.mxu0 0.0
    %112 = vmatprep.subr.mxu0 0.0
    %113 = vmatpush2.msra.mxu0 0.0
    %114 = vmatprep.subr.mxu0 0.0
    %115 = vmatpush2.msra.mxu0 0.0
    %116 = vmatprep.subr.mxu0 0.0
    %117 = vmatpush2.msra.mxu0 0.0
    %118 = vmatprep.subr.mxu0 0.0
    %119 = vmatpush2.msra.mxu0 0.0
    %120 = vmatprep.subr.mxu0 0.0
    %121 = vmatpush2.msra.mxu0 0.0
    %122 = vmatprep.subr.mxu0 0.0
    %123 = vmatpush2.msra.mxu0 0.0
    %124 = vmatprep.subr.mxu0 0.0
    %125 = vmatpush2.msra.mxu0 0.0
    %126 = vmatprep.subr.mxu0 0.0
    %127 = vmatpush2.msra.mxu0 0.0
    %128 = vmatprep.mubr.f32.mxu0 0.0
    %129 = vmatmul.mubr.f32.gmra.mxu0 %v55
    %v130 = vpop.f32.mrf.mxu0
    %v131 = vadd.f32 %v51, %v130
    %v132 = vpop.f32.mrf.mxu0
    %133 = vmatprep.mubr.f32.mxu0 0.0
    %134 = vmatmul.mubr.f32.gmra.mxu0 %v58
    %v135 = vpop.f32.mrf.mxu0
    %v136 = vadd.f32 %v51, %v135
    %v137 = vpop.f32.mrf.mxu0
    %138 = vdwg.mxu0
    %v139 = vtanh.pop %v131
    %vm140 = vcmask 261120
    %v142 = vsel %vm140, %v139, 0
    %144 = vmatprep.subr.mxu0 0.0
    %145 = vmatpush1.msra.mxu0 0.0
    %146 = vmatprep.subr.mxu0 0.0
    %147 = vmatpush1.msra.mxu0 0.0
    %148 = vmatprep.subr.mxu0 0.0
    %149 = vmatpush1.msra.mxu0 0.0
    %150 = vmatprep.subr.mxu0 0.0
    %151 = vmatpush1.msra.mxu0 0.0
    %152 = vmatprep.subr.mxu0 0.0
    %153 = vmatpush1.msra.mxu0 0.0
    %154 = vmatprep.subr.mxu0 0.0
    %155 = vmatpush1.msra.mxu0 0.0
    %156 = vmatprep.subr.mxu0 0.0
    %157 = vmatpush1.msra.mxu0 0.0
    %158 = vmatprep.subr.mxu0 0.0
    %159 = vmatpush1.msra.mxu0 0.0
    %160 = vmatprep.subr.mxu0 0.0
    %161 = vmatpush1.msra.mxu0 0.0
    %162 = vmatprep.subr.mxu0 0.0
    %163 = vmatpush1.msra.mxu0 0.0
    %164 = vmatprep.subr.mxu0 0.0
    %165 = vmatpush1.msra.mxu0 0.0
    %166 = vmatprep.subr.mxu0 0.0
    %167 = vmatpush1.msra.mxu0 0.0
    %168 = vmatprep.subr.mxu0 0.0
    %169 = vmatpush1.msra.mxu0 %v43
    %170 = vmatprep.subr.mxu0 0.0
    %171 = vmatpush1.msra.mxu0 %v42
    %172 = vmatprep.subr.mxu0 0.0
    %173 = vmatpush1.msra.mxu0 %v41
    %174 = vmatprep.subr.mxu0 0.0
    %175 = vmatpush1.msra.mxu0 %v40
    %176 = vmatprep.subr.mxu0 0.0
    %177 = vmatpush2.msra.mxu0 0.0
    %178 = vmatprep.subr.mxu0 0.0
    %179 = vmatpush2.msra.mxu0 0.0
    %180 = vmatprep.subr.mxu0 0.0
    %181 = vmatpush2.msra.mxu0 0.0
    %182 = vmatprep.subr.mxu0 0.0
    %183 = vmatpush2.msra.mxu0 0.0
    %184 = vmatprep.subr.mxu0 0.0
    %185 = vmatpush2.msra.mxu0 0.0
    %186 = vmatprep.subr.mxu0 0.0
    %187 = vmatpush2.msra.mxu0 0.0
    %188 = vmatprep.subr.mxu0 0.0
    %189 = vmatpush2.msra.mxu0 0.0
    %190 = vmatprep.subr.mxu0 0.0
    %191 = vmatpush2.msra.mxu0 0.0
    %192 = vmatprep.subr.mxu0 0.0
    %193 = vmatpush2.msra.mxu0 0.0
    %194 = vmatprep.subr.mxu0 0.0
    %195 = vmatpush2.msra.mxu0 0.0
    %196 = vmatprep.subr.mxu0 0.0
    %197 = vmatpush2.msra.mxu0 0.0
    %198 = vmatprep.subr.mxu0 0.0
    %199 = vmatpush2.msra.mxu0 0.0
    %200 = vmatprep.subr.mxu0 0.0
    %201 = vmatpush2.msra.mxu0 0.0
    %202 = vmatprep.subr.mxu0 0.0
    %203 = vmatpush2.msra.mxu0 0.0
    %204 = vmatprep.subr.mxu0 0.0
    %205 = vmatpush2.msra.mxu0 0.0
    %206 = vmatprep.subr.mxu0 0.0
    %207 = vmatpush2.msra.mxu0 0.0
    %208 = vmatprep.mubr.f32.mxu0 0.0
    %209 = vmatmul.mubr.f32.gmra.mxu0 %v142
    %v210 = vpop.f32.mrf.mxu0
    %v211 = vadd.f32 0.0, %v210
    %v212 = vpop.f32.mrf.mxu0
    %213 = vdwg.mxu0
    %v215 = vrot.slane %v211, 6
    %v217 = vadd.f32 %v131, %v215
    %v218 = vtanh.pop %v217
    %v220 = vrot.slane %v218, 2
    %v221 = vsel %vm140, %v220, 0
    %223 = vmatprep.subr.mxu0 0.0
    %224 = vmatpush1.msra.mxu0 0.0
    %225 = vmatprep.subr.mxu0 0.0
    %226 = vmatpush1.msra.mxu0 0.0
    %227 = vmatprep.subr.mxu0 0.0
    %228 = vmatpush1.msra.mxu0 0.0
    %229 = vmatprep.subr.mxu0 0.0
    %230 = vmatpush1.msra.mxu0 0.0
    %231 = vmatprep.subr.mxu0 0.0
    %232 = vmatpush1.msra.mxu0 0.0
    %233 = vmatprep.subr.mxu0 0.0
    %234 = vmatpush1.msra.mxu0 0.0
    %235 = vmatprep.subr.mxu0 0.0
    %236 = vmatpush1.msra.mxu0 0.0
    %237 = vmatprep.subr.mxu0 0.0
    %238 = vmatpush1.msra.mxu0 0.0
    %239 = vmatprep.subr.mxu0 0.0
    %240 = vmatpush1.msra.mxu0 0.0
    %241 = vmatprep.subr.mxu0 0.0
    %242 = vmatpush1.msra.mxu0 0.0
    %243 = vmatprep.subr.mxu0 0.0
    %244 = vmatpush1.msra.mxu0 0.0
    %245 = vmatprep.subr.mxu0 0.0
    %246 = vmatpush1.msra.mxu0 0.0
    %247 = vmatprep.subr.mxu0 0.0
    %248 = vmatpush1.msra.mxu0 %v43
    %249 = vmatprep.subr.mxu0 0.0
    %250 = vmatpush1.msra.mxu0 %v42
    %251 = vmatprep.subr.mxu0 0.0
    %252 = vmatpush1.msra.mxu0 %v41
    %253 = vmatprep.subr.mxu0 0.0
    %254 = vmatpush1.msra.mxu0 %v40
    %255 = vmatprep.subr.mxu0 0.0
    %256 = vmatpush2.msra.mxu0 0.0
    %257 = vmatprep.subr.mxu0 0.0
    %258 = vmatpush2.msra.mxu0 0.0
    %259 = vmatprep.subr.mxu0 0.0
    %260 = vmatpush2.msra.mxu0 0.0
    %261 = vmatprep.subr.mxu0 0.0
    %262 = vmatpush2.msra.mxu0 0.0
    %263 = vmatprep.subr.mxu0 0.0
    %264 = vmatpush2.msra.mxu0 0.0
    %265 = vmatprep.subr.mxu0 0.0
    %266 = vmatpush2.msra.mxu0 0.0
    %267 = vmatprep.subr.mxu0 0.0
    %268 = vmatpush2.msra.mxu0 0.0
    %269 = vmatprep.subr.mxu0 0.0
    %270 = vmatpush2.msra.mxu0 0.0
    %271 = vmatprep.subr.mxu0 0.0
    %272 = vmatpush2.msra.mxu0 0.0
    %273 = vmatprep.subr.mxu0 0.0
    %274 = vmatpush2.msra.mxu0 0.0
    %275 = vmatprep.subr.mxu0 0.0
    %276 = vmatpush2.msra.mxu0 0.0
    %277 = vmatprep.subr.mxu0 0.0
    %278 = vmatpush2.msra.mxu0 0.0
    %279 = vmatprep.subr.mxu0 0.0
    %280 = vmatpush2.msra.mxu0 0.0
    %281 = vmatprep.subr.mxu0 0.0
    %282 = vmatpush2.msra.mxu0 0.0
    %283 = vmatprep.subr.mxu0 0.0
    %284 = vmatpush2.msra.mxu0 0.0
    %285 = vmatprep.subr.mxu0 0.0
    %286 = vmatpush2.msra.mxu0 0.0
    %287 = vmatprep.mubr.f32.mxu0 0.0
    %288 = vmatmul.mubr.f32.gmra.mxu0 %v221
    %v289 = vpop.f32.mrf.mxu0
    %v290 = vadd.f32 0.0, %v289
    %v291 = vpop.f32.mrf.mxu0
    %292 = vdwg.mxu0
    %v294 = vrot.slane %v290, 4
    %v296 = vadd.f32 %v131, %v294
    %v297 = vtanh.pop %v296
    %v299 = vrot.slane %v297, 4
    %v300 = vsel %vm140, %v299, 0
    %302 = vmatprep.subr.mxu0 0.0
    %303 = vmatpush1.msra.mxu0 0.0
    %304 = vmatprep.subr.mxu0 0.0
    %305 = vmatpush1.msra.mxu0 0.0
    %306 = vmatprep.subr.mxu0 0.0
    %307 = vmatpush1.msra.mxu0 0.0
    %308 = vmatprep.subr.mxu0 0.0
    %309 = vmatpush1.msra.mxu0 0.0
    %310 = vmatprep.subr.mxu0 0.0
    %311 = vmatpush1.msra.mxu0 0.0
    %312 = vmatprep.subr.mxu0 0.0
    %313 = vmatpush1.msra.mxu0 0.0
    %314 = vmatprep.subr.mxu0 0.0
    %315 = vmatpush1.msra.mxu0 0.0
    %316 = vmatprep.subr.mxu0 0.0
    %317 = vmatpush1.msra.mxu0 0.0
    %318 = vmatprep.subr.mxu0 0.0
    %319 = vmatpush1.msra.mxu0 0.0
    %320 = vmatprep.subr.mxu0 0.0
    %321 = vmatpush1.msra.mxu0 0.0
    %322 = vmatprep.subr.mxu0 0.0
    %323 = vmatpush1.msra.mxu0 0.0
    %324 = vmatprep.subr.mxu0 0.0
    %325 = vmatpush1.msra.mxu0 0.0
    %326 = vmatprep.subr.mxu0 0.0
    %327 = vmatpush1.msra.mxu0 %v43
    %328 = vmatprep.subr.mxu0 0.0
    %329 = vmatpush1.msra.mxu0 %v42
    %330 = vmatprep.subr.mxu0 0.0
    %331 = vmatpush1.msra.mxu0 %v41
    %332 = vmatprep.subr.mxu0 0.0
    %333 = vmatpush1.msra.mxu0 %v40
    %334 = vmatprep.subr.mxu0 0.0
    %335 = vmatpush2.msra.mxu0 0.0
    %336 = vmatprep.subr.mxu0 0.0
    %337 = vmatpush2.msra.mxu0 0.0
    %338 = vmatprep.subr.mxu0 0.0
    %339 = vmatpush2.msra.mxu0 0.0
    %340 = vmatprep.subr.mxu0 0.0
    %341 = vmatpush2.msra.mxu0 0.0
    %342 = vmatprep.subr.mxu0 0.0
    %343 = vmatpush2.msra.mxu0 0.0
    %344 = vmatprep.subr.mxu0 0.0
    %345 = vmatpush2.msra.mxu0 0.0
    %346 = vmatprep.subr.mxu0 0.0
    %347 = vmatpush2.msra.mxu0 0.0
    %348 = vmatprep.subr.mxu0 0.0
    %349 = vmatpush2.msra.mxu0 0.0
    %350 = vmatprep.subr.mxu0 0.0
    %351 = vmatpush2.msra.mxu0 0.0
    %352 = vmatprep.subr.mxu0 0.0
    %353 = vmatpush2.msra.mxu0 0.0
    %354 = vmatprep.subr.mxu0 0.0
    %355 = vmatpush2.msra.mxu0 0.0
    %356 = vmatprep.subr.mxu0 0.0
    %357 = vmatpush2.msra.mxu0 0.0
    %358 = vmatprep.subr.mxu0 0.0
    %359 = vmatpush2.msra.mxu0 0.0
    %360 = vmatprep.subr.mxu0 0.0
    %361 = vmatpush2.msra.mxu0 0.0
    %362 = vmatprep.subr.mxu0 0.0
    %363 = vmatpush2.msra.mxu0 0.0
    %364 = vmatprep.subr.mxu0 0.0
    %365 = vmatpush2.msra.mxu0 0.0
    %366 = vmatprep.mubr.f32.mxu0 0.0
    %367 = vmatmul.mubr.f32.gmra.mxu0 %v300
    %v368 = vpop.f32.mrf.mxu0
    %v369 = vadd.f32 0.0, %v368
    %v370 = vpop.f32.mrf.mxu0
    %371 = vdwg.mxu0
    %v373 = vrot.slane %v369, 2
    %v375 = vadd.f32 %v131, %v373
    %v376 = vtanh.pop %v375
    %v378 = vrot.slane %v376, 6
    %v379 = vsel %vm140, %v378, 0
    %381 = vmatprep.subr.mxu0 0.0
    %382 = vmatpush1.msra.mxu0 0.0
    %383 = vmatprep.subr.mxu0 0.0
    %384 = vmatpush1.msra.mxu0 0.0
    %385 = vmatprep.subr.mxu0 0.0
    %386 = vmatpush1.msra.mxu0 0.0
    %387 = vmatprep.subr.mxu0 0.0
    %388 = vmatpush1.msra.mxu0 0.0
    %389 = vmatprep.subr.mxu0 0.0
    %390 = vmatpush1.msra.mxu0 0.0
    %391 = vmatprep.subr.mxu0 0.0
    %392 = vmatpush1.msra.mxu0 0.0
    %393 = vmatprep.subr.mxu0 0.0
    %394 = vmatpush1.msra.mxu0 0.0
    %395 = vmatprep.subr.mxu0 0.0
    %396 = vmatpush1.msra.mxu0 0.0
    %397 = vmatprep.subr.mxu0 0.0
    %398 = vmatpush1.msra.mxu0 0.0
    %399 = vmatprep.subr.mxu0 0.0
    %400 = vmatpush1.msra.mxu0 0.0
    %401 = vmatprep.subr.mxu0 0.0
    %402 = vmatpush1.msra.mxu0 0.0
    %403 = vmatprep.subr.mxu0 0.0
    %404 = vmatpush1.msra.mxu0 0.0
    %405 = vmatprep.subr.mxu0 0.0
    %406 = vmatpush1.msra.mxu0 %v43
    %407 = vmatprep.subr.mxu0 0.0
    %408 = vmatpush1.msra.mxu0 %v42
    %409 = vmatprep.subr.mxu0 0.0
    %410 = vmatpush1.msra.mxu0 %v41
    %411 = vmatprep.subr.mxu0 0.0
    %412 = vmatpush1.msra.mxu0 %v40
    %413 = vmatprep.subr.mxu0 0.0
    %414 = vmatpush2.msra.mxu0 0.0
    %415 = vmatprep.subr.mxu0 0.0
    %416 = vmatpush2.msra.mxu0 0.0
    %417 = vmatprep.subr.mxu0 0.0
    %418 = vmatpush2.msra.mxu0 0.0
    %419 = vmatprep.subr.mxu0 0.0
    %420 = vmatpush2.msra.mxu0 0.0
    %421 = vmatprep.subr.mxu0 0.0
    %422 = vmatpush2.msra.mxu0 0.0
    %423 = vmatprep.subr.mxu0 0.0
    %424 = vmatpush2.msra.mxu0 0.0
    %425 = vmatprep.subr.mxu0 0.0
    %426 = vmatpush2.msra.mxu0 0.0
    %427 = vmatprep.subr.mxu0 0.0
    %428 = vmatpush2.msra.mxu0 0.0
    %429 = vmatprep.subr.mxu0 0.0
    %430 = vmatpush2.msra.mxu0 0.0
    %431 = vmatprep.subr.mxu0 0.0
    %432 = vmatpush2.msra.mxu0 0.0
    %433 = vmatprep.subr.mxu0 0.0
    %434 = vmatpush2.msra.mxu0 0.0
    %435 = vmatprep.subr.mxu0 0.0
    %436 = vmatpush2.msra.mxu0 0.0
    %437 = vmatprep.subr.mxu0 0.0
    %438 = vmatpush2.msra.mxu0 0.0
    %439 = vmatprep.subr.mxu0 0.0
    %440 = vmatpush2.msra.mxu0 0.0
    %441 = vmatprep.subr.mxu0 0.0
    %442 = vmatpush2.msra.mxu0 0.0
    %443 = vmatprep.subr.mxu0 0.0
    %444 = vmatpush2.msra.mxu0 0.0
    %445 = vmatprep.mubr.f32.mxu0 0.0
    %446 = vmatmul.mubr.f32.gmra.mxu0 %v379
    %v447 = vpop.f32.mrf.mxu0
    %v448 = vadd.f32 0.0, %v447
    %v449 = vpop.f32.mrf.mxu0
    %450 = vdwg.mxu0
    %v451 = vadd.f32 %v136, %v448
    %v452 = vtanh.pop %v451
    %v454 = vsel %vm140, %v452, 0
    %456 = vmatprep.subr.mxu0 0.0
    %457 = vmatpush1.msra.mxu0 0.0
    %458 = vmatprep.subr.mxu0 0.0
    %459 = vmatpush1.msra.mxu0 0.0
    %460 = vmatprep.subr.mxu0 0.0
    %461 = vmatpush1.msra.mxu0 0.0
    %462 = vmatprep.subr.mxu0 0.0
    %463 = vmatpush1.msra.mxu0 0.0
    %464 = vmatprep.subr.mxu0 0.0
    %465 = vmatpush1.msra.mxu0 0.0
    %466 = vmatprep.subr.mxu0 0.0
    %467 = vmatpush1.msra.mxu0 0.0
    %468 = vmatprep.subr.mxu0 0.0
    %469 = vmatpush1.msra.mxu0 0.0
    %470 = vmatprep.subr.mxu0 0.0
    %471 = vmatpush1.msra.mxu0 0.0
    %472 = vmatprep.subr.mxu0 0.0
    %473 = vmatpush1.msra.mxu0 0.0
    %474 = vmatprep.subr.mxu0 0.0
    %475 = vmatpush1.msra.mxu0 0.0
    %476 = vmatprep.subr.mxu0 0.0
    %477 = vmatpush1.msra.mxu0 0.0
    %478 = vmatprep.subr.mxu0 0.0
    %479 = vmatpush1.msra.mxu0 0.0
    %480 = vmatprep.subr.mxu0 0.0
    %481 = vmatpush1.msra.mxu0 %v43
    %482 = vmatprep.subr.mxu0 0.0
    %483 = vmatpush1.msra.mxu0 %v42
    %484 = vmatprep.subr.mxu0 0.0
    %485 = vmatpush1.msra.mxu0 %v41
    %486 = vmatprep.subr.mxu0 0.0
    %487 = vmatpush1.msra.mxu0 %v40
    %488 = vmatprep.subr.mxu0 0.0
    %489 = vmatpush2.msra.mxu0 0.0
    %490 = vmatprep.subr.mxu0 0.0
    %491 = vmatpush2.msra.mxu0 0.0
    %492 = vmatprep.subr.mxu0 0.0
    %493 = vmatpush2.msra.mxu0 0.0
    %494 = vmatprep.subr.mxu0 0.0
    %495 = vmatpush2.msra.mxu0 0.0
    %496 = vmatprep.subr.mxu0 0.0
    %497 = vmatpush2.msra.mxu0 0.0
    %498 = vmatprep.subr.mxu0 0.0
    %499 = vmatpush2.msra.mxu0 0.0
    %500 = vmatprep.subr.mxu0 0.0
    %501 = vmatpush2.msra.mxu0 0.0
    %502 = vmatprep.subr.mxu0 0.0
    %503 = vmatpush2.msra.mxu0 0.0
    %504 = vmatprep.subr.mxu0 0.0
    %505 = vmatpush2.msra.mxu0 0.0
    %506 = vmatprep.subr.mxu0 0.0
    %507 = vmatpush2.msra.mxu0 0.0
    %508 = vmatprep.subr.mxu0 0.0
    %509 = vmatpush2.msra.mxu0 0.0
    %510 = vmatprep.subr.mxu0 0.0
    %511 = vmatpush2.msra.mxu0 0.0
    %512 = vmatprep.subr.mxu0 0.0
    %513 = vmatpush2.msra.mxu0 0.0
    %514 = vmatprep.subr.mxu0 0.0
    %515 = vmatpush2.msra.mxu0 0.0
    %516 = vmatprep.subr.mxu0 0.0
    %517 = vmatpush2.msra.mxu0 0.0
    %518 = vmatprep.subr.mxu0 0.0
    %519 = vmatpush2.msra.mxu0 0.0
    %520 = vmatprep.mubr.f32.mxu0 0.0
    %521 = vmatmul.mubr.f32.gmra.mxu0 %v454
    %v522 = vpop.f32.mrf.mxu0
    %v523 = vadd.f32 0.0, %v522
    %v524 = vpop.f32.mrf.mxu0
    %525 = vdwg.mxu0
    %v527 = vrot.slane %v523, 6
    %v529 = vadd.f32 %v136, %v527
    %v530 = vtanh.pop %v529
    %v532 = vrot.slane %v530, 2
    %v533 = vsel %vm140, %v532, 0
    %535 = vmatprep.subr.mxu0 0.0
    %536 = vmatpush1.msra.mxu0 0.0
    %537 = vmatprep.subr.mxu0 0.0
    %538 = vmatpush1.msra.mxu0 0.0
    %539 = vmatprep.subr.mxu0 0.0
    %540 = vmatpush1.msra.mxu0 0.0
    %541 = vmatprep.subr.mxu0 0.0
    %542 = vmatpush1.msra.mxu0 0.0
    %543 = vmatprep.subr.mxu0 0.0
    %544 = vmatpush1.msra.mxu0 0.0
    %545 = vmatprep.subr.mxu0 0.0
    %546 = vmatpush1.msra.mxu0 0.0
    %547 = vmatprep.subr.mxu0 0.0
    %548 = vmatpush1.msra.mxu0 0.0
    %549 = vmatprep.subr.mxu0 0.0
    %550 = vmatpush1.msra.mxu0 0.0
    %551 = vmatprep.subr.mxu0 0.0
    %552 = vmatpush1.msra.mxu0 0.0
    %553 = vmatprep.subr.mxu0 0.0
    %554 = vmatpush1.msra.mxu0 0.0
    %555 = vmatprep.subr.mxu0 0.0
    %556 = vmatpush1.msra.mxu0 0.0
    %557 = vmatprep.subr.mxu0 0.0
    %558 = vmatpush1.msra.mxu0 0.0
    %559 = vmatprep.subr.mxu0 0.0
    %560 = vmatpush1.msra.mxu0 %v43
    %561 = vmatprep.subr.mxu0 0.0
    %562 = vmatpush1.msra.mxu0 %v42
    %563 = vmatprep.subr.mxu0 0.0
    %564 = vmatpush1.msra.mxu0 %v41
    %565 = vmatprep.subr.mxu0 0.0
    %566 = vmatpush1.msra.mxu0 %v40
    %567 = vmatprep.subr.mxu0 0.0
    %568 = vmatpush2.msra.mxu0 0.0
    %569 = vmatprep.subr.mxu0 0.0
    %570 = vmatpush2.msra.mxu0 0.0
    %571 = vmatprep.subr.mxu0 0.0
    %572 = vmatpush2.msra.mxu0 0.0
    %573 = vmatprep.subr.mxu0 0.0
    %574 = vmatpush2.msra.mxu0 0.0
    %575 = vmatprep.subr.mxu0 0.0
    %576 = vmatpush2.msra.mxu0 0.0
    %577 = vmatprep.subr.mxu0 0.0
    %578 = vmatpush2.msra.mxu0 0.0
    %579 = vmatprep.subr.mxu0 0.0
    %580 = vmatpush2.msra.mxu0 0.0
    %581 = vmatprep.subr.mxu0 0.0
    %582 = vmatpush2.msra.mxu0 0.0
    %583 = vmatprep.subr.mxu0 0.0
    %584 = vmatpush2.msra.mxu0 0.0
    %585 = vmatprep.subr.mxu0 0.0
    %586 = vmatpush2.msra.mxu0 0.0
    %587 = vmatprep.subr.mxu0 0.0
    %588 = vmatpush2.msra.mxu0 0.0
    %589 = vmatprep.subr.mxu0 0.0
    %590 = vmatpush2.msra.mxu0 0.0
    %591 = vmatprep.subr.mxu0 0.0
    %592 = vmatpush2.msra.mxu0 0.0
    %593 = vmatprep.subr.mxu0 0.0
    %594 = vmatpush2.msra.mxu0 0.0
    %595 = vmatprep.subr.mxu0 0.0
    %596 = vmatpush2.msra.mxu0 0.0
    %597 = vmatprep.subr.mxu0 0.0
    %598 = vmatpush2.msra.mxu0 0.0
    %599 = vmatprep.mubr.f32.mxu0 0.0
    %600 = vmatmul.mubr.f32.gmra.mxu0 %v533
    %v601 = vpop.f32.mrf.mxu0
    %v602 = vadd.f32 0.0, %v601
    %v603 = vpop.f32.mrf.mxu0
    %604 = vdwg.mxu0
    %v606 = vrot.slane %v602, 4
    %v608 = vadd.f32 %v136, %v606
    %v609 = vtanh.pop %v608
    %v611 = vrot.slane %v609, 4
    %v612 = vsel %vm140, %v611, 0
    %614 = vmatprep.subr.mxu0 0.0
    %615 = vmatpush1.msra.mxu0 0.0
    %616 = vmatprep.subr.mxu0 0.0
    %617 = vmatpush1.msra.mxu0 0.0
    %618 = vmatprep.subr.mxu0 0.0
    %619 = vmatpush1.msra.mxu0 0.0
    %620 = vmatprep.subr.mxu0 0.0
    %621 = vmatpush1.msra.mxu0 0.0
    %622 = vmatprep.subr.mxu0 0.0
    %623 = vmatpush1.msra.mxu0 0.0
    %624 = vmatprep.subr.mxu0 0.0
    %625 = vmatpush1.msra.mxu0 0.0
    %626 = vmatprep.subr.mxu0 0.0
    %627 = vmatpush1.msra.mxu0 0.0
    %628 = vmatprep.subr.mxu0 0.0
    %629 = vmatpush1.msra.mxu0 0.0
    %630 = vmatprep.subr.mxu0 0.0
    %631 = vmatpush1.msra.mxu0 0.0
    %632 = vmatprep.subr.mxu0 0.0
    %633 = vmatpush1.msra.mxu0 0.0
    %634 = vmatprep.subr.mxu0 0.0
    %635 = vmatpush1.msra.mxu0 0.0
    %636 = vmatprep.subr.mxu0 0.0
    %637 = vmatpush1.msra.mxu0 0.0
    %638 = vmatprep.subr.mxu0 0.0
    %639 = vmatpush1.msra.mxu0 %v43
    %640 = vmatprep.subr.mxu0 0.0
    %641 = vmatpush1.msra.mxu0 %v42
    %642 = vmatprep.subr.mxu0 0.0
    %643 = vmatpush1.msra.mxu0 %v41
    %644 = vmatprep.subr.mxu0 0.0
    %645 = vmatpush1.msra.mxu0 %v40
    %646 = vmatprep.subr.mxu0 0.0
    %647 = vmatpush2.msra.mxu0 0.0
    %648 = vmatprep.subr.mxu0 0.0
    %649 = vmatpush2.msra.mxu0 0.0
    %650 = vmatprep.subr.mxu0 0.0
    %651 = vmatpush2.msra.mxu0 0.0
    %652 = vmatprep.subr.mxu0 0.0
    %653 = vmatpush2.msra.mxu0 0.0
    %654 = vmatprep.subr.mxu0 0.0
    %655 = vmatpush2.msra.mxu0 0.0
    %656 = vmatprep.subr.mxu0 0.0
    %657 = vmatpush2.msra.mxu0 0.0
    %658 = vmatprep.subr.mxu0 0.0
    %659 = vmatpush2.msra.mxu0 0.0
    %660 = vmatprep.subr.mxu0 0.0
    %661 = vmatpush2.msra.mxu0 0.0
    %662 = vmatprep.subr.mxu0 0.0
    %663 = vmatpush2.msra.mxu0 0.0
    %664 = vmatprep.subr.mxu0 0.0
    %665 = vmatpush2.msra.mxu0 0.0
    %666 = vmatprep.subr.mxu0 0.0
    %667 = vmatpush2.msra.mxu0 0.0
    %668 = vmatprep.subr.mxu0 0.0
    %669 = vmatpush2.msra.mxu0 0.0
    %670 = vmatprep.subr.mxu0 0.0
    %671 = vmatpush2.msra.mxu0 0.0
    %672 = vmatprep.subr.mxu0 0.0
    %673 = vmatpush2.msra.mxu0 0.0
    %674 = vmatprep.subr.mxu0 0.0
    %675 = vmatpush2.msra.mxu0 0.0
    %676 = vmatprep.subr.mxu0 0.0
    %677 = vmatpush2.msra.mxu0 0.0
    %678 = vmatprep.mubr.f32.mxu0 0.0
    %679 = vmatmul.mubr.f32.gmra.mxu0 %v612
    %v680 = vpop.f32.mrf.mxu0
    %v681 = vadd.f32 0.0, %v680
    %v682 = vpop.f32.mrf.mxu0
    %683 = vdwg.mxu0
    %v685 = vrot.slane %v681, 2
    %v687 = vadd.f32 %v136, %v685
    %v688 = vtanh.pop %v687
    %v689 = vld [vmem:[%s4] sm:$0x1]
    %v691 = vlaneseq
    %v692 = vshrl.u32 %v691, 7
    %v693 = vsub.s32 0, %v692
    %v694 = vrot.slane %v689, %v693
    %v696 = vmul.f32 %v688, %v694
    %vm697 = vcmask 261126
    %v698 = vsel %vm697, %v696, 0.0
    %699 = vadd.xlane.f32.xlu0 %v698
    %v700 = vpop.xlane.xlu0 %699
    %v701 = vld [vmem:[#allocation2] sm:$0x1]
    %v703 = vlaneseq
    %v704 = vshrl.u32 %v703, 7
    %v705 = vsub.s32 0, %v704
    %v706 = vrot.slane %v701, %v705
    %v708 = vadd.f32 %v700, %v706
    %vm709 = vcmask 7174
    %710 = vst.msk [vmem:[%s6 - $0x6] sm:$0xc0] %vm709, %v708
    // Predicated region
    $region30: #{tpu_custom_call.1} parent=1 // pred_check
      _
    $region31: #{tpu_custom_call.1} parent=1 // pred_check_branch
      %712 = sbr.rel (0) target = $region33
    $region32: #{tpu_custom_call.1} parent=1 // pred_region
      _
    $region33: #{tpu_custom_call.1} parent=1 // pred_fallthru
      _
    // Predicated region
    $region34: #{tpu_custom_call.1} parent=1 // pred_check
      _
    $region35: #{tpu_custom_call.1} parent=1 // pred_check_branch
      %714 = sbr.rel (0) target = $region37
    $region36: #{tpu_custom_call.1} parent=1 // pred_region
      _
    $region37: #{tpu_custom_call.1} parent=1 // pred_fallthru
      _
    %715 = vsyncpa [#allocation4], 1

</llo_original>
